<compile_context>
chip_gen: v7x
topology: tpu7x:2x2x1
jax: 0.10.0
libtpu: 0.0.40
codegen_flags: <defaults>
</compile_context>

<pallas_src>
import functools

import jax
import jax.numpy as jnp
from jax.experimental import pallas as pl
from jax.experimental.pallas import tpu as pltpu


def _piarch_kernel(xt_ref, w1t_ref, b1t_ref, w2t_ref, b2t_ref, w3t_ref, b3t_ref,
                   o_ref):
    # ---- inputs in feature-major layout ----
    xt = xt_ref[...]                 # (2, tn)
    xx = xt[0:1, :]                  # 'x'  (1, tn)
    xy = xt[1:2, :]                  # 'y'  (1, tn)

    # ---- layer 1 on the VPU: K=2 is far too shallow for the MXU ----
    w1t = w1t_ref[...]               # (H, 2)
    h1 = jnp.tanh(w1t[:, 0:1] * xx + w1t[:, 1:2] * xy + b1t_ref[...])   # (H, tn)

    # ---- hidden + output layers on the MXU (f32 accumulation) ----
    h2 = jnp.tanh(
        jnp.dot(w2t_ref[...], h1, preferred_element_type=jnp.float32)
        + b2t_ref[...]
    )                                                                    # (H, tn)
    out6 = (
        jnp.dot(w3t_ref[...], h2, preferred_element_type=jnp.float32)
        + b3t_ref[...]
    )                                                                    # (6, tn)
    # rows of out6: [vx, vy, p, ux, uy, r]

    # ---- hard-constraint enforcement as whole-slab VPU math ----
    g = (2.0 - xy) * xx * xy                                             # (1, tn)
    tn = out6.shape[1]
    row = jax.lax.broadcasted_iota(jnp.int32, (6, tn), 0)
    g_fac = jnp.where((row == 2) | (row == 5), 1.0, g)        # p, r untouched
    omx_fac = jnp.where((row == 1) | (row == 4), 1.0 - xx, 1.0)  # vy, uy extra
    res6 = out6 * g_fac * omx_fac
    res6 = jnp.where(row == 0, res6 + xy, res6)               # vx gets + y

    o_ref[0:6, :] = res6                                      # vx,vy,p,ux,uy,r
    o_ref[6:8, :] = res6[3:5, :] * 0.008                      # zx = 0.008*ux, zy


def _round_up(a, b):
    return ((a + b - 1) // b) * b


@functools.partial(jax.jit, static_argnames=("tile_n",))
def piarch_net_strong(x, params, *, tile_n=4096):
    """x: [N, 2] float32. params: dict of MLP weights ((in,out) layout).

    Returns [N, 8] float32 with columns (vx, vy, p, ux, uy, r, zx, zy).
    """
    w1, b1, w2, b2, w3, b3 = (
        params["w1"], params["b1"], params["w2"], params["b2"],
        params["w3"], params["b3"],
    )
    N, Fin = x.shape
    H = w1.shape[1]
    Fout = w3.shape[1]          # 6 raw outputs
    F_final = 8                 # 6 constrained + zx + zy

    # --- tile selection (static): big tiles, but keep >= 2 grid steps when
    #     there is enough data (v7x megacore), and support arbitrary N. ---
    if N <= 2 * tile_n:
        tn = max(128, _round_up(-(-N // 2), 128))
    else:
        tn = tile_n
    n_pad = _round_up(N, tn)
    pad = n_pad - N

    x_p = jnp.pad(x, ((0, pad), (0, 0))) if pad else x
    xt = x_p.T                                   # (2, n_pad)  lane-dense points

    # Pre-transposed weights / biases (feature-major).
    w1t = w1.T                                   # (H, 2)
    w2t = w2.T                                   # (H, H)
    w3t = w3.T                                   # (6, H)
    b1t = b1.reshape(H, 1)
    b2t = b2.reshape(H, 1)
    b3t = b3.reshape(Fout, 1)

    grid = (n_pad // tn,)
    full = lambda i: (0, 0)                      # whole-array blocks (weights)

    cost = pl.CostEstimate(
        flops=2 * n_pad * (Fin * H + H * H + H * Fout) + 20 * n_pad,
        transcendentals=2 * H * n_pad,
        bytes_accessed=4 * n_pad * (Fin + F_final)
        + 4 * (Fin * H + H * H + H * Fout + 2 * H + Fout),
    )

    out_t = pl.pallas_call(
        _piarch_kernel,
        out_shape=jax.ShapeDtypeStruct((F_final, n_pad), jnp.float32),
        grid_spec=pltpu.PrefetchScalarGridSpec(
            num_scalar_prefetch=0,
            grid=grid,
            in_specs=[
                pl.BlockSpec((Fin, tn), lambda i: (0, i)),   # x tile (2, tn)
                pl.BlockSpec((H, Fin), full),                # w1^T
                pl.BlockSpec((H, 1), full),                  # b1
                pl.BlockSpec((H, H), full),                  # w2^T
                pl.BlockSpec((H, 1), full),                  # b2
                pl.BlockSpec((Fout, H), full),               # w3^T
                pl.BlockSpec((Fout, 1), full),               # b3
            ],
            out_specs=pl.BlockSpec((F_final, tn), lambda i: (0, i)),
        ),
        compiler_params=pltpu.CompilerParams(
            dimension_semantics=("parallel",)
        ),
        cost_estimate=cost,
    )(xt, w1t, b1t, w2t, b2t, w3t, b3t)

    return out_t.T[:N]                           # back to [N, 8]


def init_params(key, in_dim=2, hidden=32, out_dim=6):
    ks = jax.random.split(key, 6)
    s1 = 1.0 / jnp.sqrt(in_dim)
    s2 = 1.0 / jnp.sqrt(hidden)
    return {
        "w1": jax.random.uniform(ks[0], (in_dim, hidden), jnp.float32, -s1, s1),
        "b1": jax.random.uniform(ks[1], (1, hidden), jnp.float32, -s1, s1),
        "w2": jax.random.uniform(ks[2], (hidden, hidden), jnp.float32, -s2, s2),
        "b2": jax.random.uniform(ks[3], (1, hidden), jnp.float32, -s2, s2),
        "w3": jax.random.uniform(ks[4], (hidden, out_dim), jnp.float32, -s2, s2),
        "b3": jax.random.uniform(ks[5], (1, out_dim), jnp.float32, -s2, s2),
    }


def _reference(x, params):
    h1 = jnp.tanh(x @ params["w1"] + params["b1"])
    h2 = jnp.tanh(h1 @ params["w2"] + params["b2"])
    out = h2 @ params["w3"] + params["b3"]
    xx, xy = x[:, 0:1], x[:, 1:2]
    g = (2.0 - xy) * xx * xy
    vx = xy + out[:, 0:1] * g
    vy = out[:, 1:2] * g * (1.0 - xx)
    p = out[:, 2:3]
    ux = out[:, 3:4] * g
    uy = out[:, 4:5] * g * (1.0 - xx)
    r = out[:, 5:6]
    return jnp.concatenate([vx, vy, p, ux, uy, r, ux * 0.008, uy * 0.008], axis=1)


if __name__ == "__main__":
    key = jax.random.PRNGKey(0)
    kx, kp = jax.random.split(key)

    N = 256  # number of collocation points
    # coordinates: 'x' in [0, 1], 'y' in [0, 2]
    xs = jax.random.uniform(kx, (N, 2), jnp.float32)
    x = xs.at[:, 1].multiply(2.0)

    params = init_params(kp)

    out = piarch_net_strong(x, params)
    out = jax.block_until_ready(out)

    ref = _reference(x, params)
    assert out.shape == (N, 8)
    assert jnp.allclose(out, ref, atol=1e-5, rtol=1e-5), "mismatch vs reference"

    print("KERNEL_OK")
</pallas_src>

<mosaic_0001>
module attributes {stable_mosaic.version = 11 : i64} {
  func.func @_piarch_kernel(%arg0: i32, %arg1: memref<2x128xf32, #tpu.memory_space<vmem>>, %arg2: memref<32x2xf32, #tpu.memory_space<vmem>>, %arg3: memref<32x1xf32, #tpu.memory_space<vmem>>, %arg4: memref<32x32xf32, #tpu.memory_space<vmem>>, %arg5: memref<32x1xf32, #tpu.memory_space<vmem>>, %arg6: memref<6x32xf32, #tpu.memory_space<vmem>>, %arg7: memref<6x1xf32, #tpu.memory_space<vmem>>, %arg8: memref<8x128xf32, #tpu.memory_space<vmem>>) attributes {dimension_semantics = [#tpu.dimension_semantics<parallel>], iteration_bounds = array<i64: 2>, scalar_prefetch = 0 : i64, scratch_operands = 0 : i64, tpu.core_type = #tpu.core_type<tc>, window_params = [{transform_indices = @transform_0, window_bounds = array<i64: 2, 128>}, {pipeline_mode = #tpu.pipeline_mode<synchronous>, transform_indices = @transform_1, window_bounds = array<i64: 32, 2>}, {pipeline_mode = #tpu.pipeline_mode<synchronous>, transform_indices = @transform_2, window_bounds = array<i64: 32, 1>}, {pipeline_mode = #tpu.pipeline_mode<synchronous>, transform_indices = @transform_3, window_bounds = array<i64: 32, 32>}, {pipeline_mode = #tpu.pipeline_mode<synchronous>, transform_indices = @transform_4, window_bounds = array<i64: 32, 1>}, {pipeline_mode = #tpu.pipeline_mode<synchronous>, transform_indices = @transform_5, window_bounds = array<i64: 6, 32>}, {pipeline_mode = #tpu.pipeline_mode<synchronous>, transform_indices = @transform_6, window_bounds = array<i64: 6, 1>}, {transform_indices = @transform_7, window_bounds = array<i64: 8, 128>}]} {
    %c0 = arith.constant 0 : index
    %c0_0 = arith.constant 0 : index
    %0 = vector.load %arg1[%c0, %c0_0] : memref<2x128xf32, #tpu.memory_space<vmem>>, vector<2x128xf32>
    %1 = vector.extract_strided_slice %0 {offsets = [0, 0], sizes = [1, 128], strides = [1, 1]} : vector<2x128xf32> to vector<1x128xf32>
    %2 = vector.extract_strided_slice %0 {offsets = [1, 0], sizes = [1, 128], strides = [1, 1]} : vector<2x128xf32> to vector<1x128xf32>
    %c0_1 = arith.constant 0 : index
    %c0_2 = arith.constant 0 : index
    %3 = vector.load %arg2[%c0_1, %c0_2] : memref<32x2xf32, #tpu.memory_space<vmem>>, vector<32x2xf32>
    %4 = vector.extract_strided_slice %3 {offsets = [0, 0], sizes = [32, 1], strides = [1, 1]} : vector<32x2xf32> to vector<32x1xf32>
    %5 = vector.broadcast %4 : vector<32x1xf32> to vector<32x128xf32>
    %6 = vector.broadcast %1 : vector<1x128xf32> to vector<32x128xf32>
    %7 = arith.mulf %5, %6 : vector<32x128xf32>
    %8 = vector.extract_strided_slice %3 {offsets = [0, 1], sizes = [32, 1], strides = [1, 1]} : vector<32x2xf32> to vector<32x1xf32>
    %9 = vector.broadcast %8 : vector<32x1xf32> to vector<32x128xf32>
    %10 = vector.broadcast %2 : vector<1x128xf32> to vector<32x128xf32>
    %11 = arith.mulf %9, %10 : vector<32x128xf32>
    %12 = arith.addf %7, %11 : vector<32x128xf32>
    %c0_3 = arith.constant 0 : index
    %c0_4 = arith.constant 0 : index
    %13 = vector.load %arg3[%c0_3, %c0_4] : memref<32x1xf32, #tpu.memory_space<vmem>>, vector<32x1xf32>
    %14 = vector.broadcast %13 : vector<32x1xf32> to vector<32x128xf32>
    %15 = arith.addf %12, %14 : vector<32x128xf32>
    %16 = math.tanh %15 : vector<32x128xf32>
    %c0_5 = arith.constant 0 : index
    %c0_6 = arith.constant 0 : index
    %17 = vector.load %arg4[%c0_5, %c0_6] : memref<32x32xf32, #tpu.memory_space<vmem>>, vector<32x32xf32>
    %cst = arith.constant dense<0.000000e+00> : vector<32x128xf32>
    %18 = tpu.matmul %17, %16, %cst {dimension_numbers = #tpu.dot_dimension_numbers<[1], [0], [0], [1], [0, 0, 1, 1], [], []>} : vector<32x32xf32>, vector<32x128xf32>, vector<32x128xf32> -> vector<32x128xf32>
    %c0_7 = arith.constant 0 : index
    %c0_8 = arith.constant 0 : index
    %19 = vector.load %arg5[%c0_7, %c0_8] : memref<32x1xf32, #tpu.memory_space<vmem>>, vector<32x1xf32>
    %20 = vector.broadcast %19 : vector<32x1xf32> to vector<32x128xf32>
    %21 = arith.addf %18, %20 : vector<32x128xf32>
    %22 = math.tanh %21 : vector<32x128xf32>
    %c0_9 = arith.constant 0 : index
    %c0_10 = arith.constant 0 : index
    %23 = vector.load %arg6[%c0_9, %c0_10] : memref<6x32xf32, #tpu.memory_space<vmem>>, vector<6x32xf32>
    %cst_11 = arith.constant dense<0.000000e+00> : vector<6x128xf32>
    %24 = tpu.matmul %23, %22, %cst_11 {dimension_numbers = #tpu.dot_dimension_numbers<[1], [0], [0], [1], [0, 0, 1, 1], [], []>} : vector<6x32xf32>, vector<32x128xf32>, vector<6x128xf32> -> vector<6x128xf32>
    %c0_12 = arith.constant 0 : index
    %c0_13 = arith.constant 0 : index
    %25 = vector.load %arg7[%c0_12, %c0_13] : memref<6x1xf32, #tpu.memory_space<vmem>>, vector<6x1xf32>
    %26 = vector.broadcast %25 : vector<6x1xf32> to vector<6x128xf32>
    %27 = arith.addf %24, %26 : vector<6x128xf32>
    %cst_14 = arith.constant 2.000000e+00 : f32
    %28 = vector.broadcast %cst_14 : f32 to vector<1x128xf32>
    %29 = arith.subf %28, %2 : vector<1x128xf32>
    %30 = arith.mulf %29, %1 : vector<1x128xf32>
    %31 = arith.mulf %30, %2 : vector<1x128xf32>
    %32 = tpu.iota {dimensions = array<i32: 0>} : vector<6x128xi32>
    %c2_i32 = arith.constant 2 : i32
    %33 = vector.broadcast %c2_i32 : i32 to vector<6x128xi32>
    %34 = arith.cmpi eq, %32, %33 : vector<6x128xi32>
    %c5_i32 = arith.constant 5 : i32
    %35 = vector.broadcast %c5_i32 : i32 to vector<6x128xi32>
    %36 = arith.cmpi eq, %32, %35 : vector<6x128xi32>
    %37 = arith.ori %34, %36 : vector<6x128xi1>
    %cst_15 = arith.constant 1.000000e+00 : f32
    %38 = vector.broadcast %cst_15 : f32 to vector<6x128xf32>
    %39 = vector.shape_cast %31 : vector<1x128xf32> to vector<1x128xf32>
    %40 = vector.broadcast %39 : vector<1x128xf32> to vector<6x128xf32>
    %41 = arith.select %37, %38, %40 : vector<6x128xi1>, vector<6x128xf32>
    %c1_i32 = arith.constant 1 : i32
    %42 = vector.broadcast %c1_i32 : i32 to vector<6x128xi32>
    %43 = arith.cmpi eq, %32, %42 : vector<6x128xi32>
    %c4_i32 = arith.constant 4 : i32
    %44 = vector.broadcast %c4_i32 : i32 to vector<6x128xi32>
    %45 = arith.cmpi eq, %32, %44 : vector<6x128xi32>
    %46 = arith.ori %43, %45 : vector<6x128xi1>
    %cst_16 = arith.constant 1.000000e+00 : f32
    %47 = vector.broadcast %cst_16 : f32 to vector<1x128xf32>
    %48 = arith.subf %47, %1 : vector<1x128xf32>
    %cst_17 = arith.constant 1.000000e+00 : f32
    %49 = vector.shape_cast %48 : vector<1x128xf32> to vector<1x128xf32>
    %50 = vector.broadcast %49 : vector<1x128xf32> to vector<6x128xf32>
    %51 = vector.broadcast %cst_17 : f32 to vector<6x128xf32>
    %52 = arith.select %46, %50, %51 : vector<6x128xi1>, vector<6x128xf32>
    %53 = arith.mulf %27, %41 : vector<6x128xf32>
    %54 = arith.mulf %53, %52 : vector<6x128xf32>
    %c0_i32 = arith.constant 0 : i32
    %55 = vector.broadcast %c0_i32 : i32 to vector<6x128xi32>
    %56 = arith.cmpi eq, %32, %55 : vector<6x128xi32>
    %57 = vector.broadcast %2 : vector<1x128xf32> to vector<6x128xf32>
    %58 = arith.addf %54, %57 : vector<6x128xf32>
    %59 = arith.select %56, %58, %54 : vector<6x128xi1>, vector<6x128xf32>
    %c0_18 = arith.constant 0 : index
    %c0_19 = arith.constant 0 : index
    %60 = vector.load %arg8[%c0_18, %c0_19] : memref<8x128xf32, #tpu.memory_space<vmem>>, vector<6x128xf32>
    tpu.vector_store %arg8[%c0_18, %c0_19], %59 {strides = array<i32>} : memref<8x128xf32, #tpu.memory_space<vmem>>, vector<6x128xf32>,
    %61 = vector.extract_strided_slice %59 {offsets = [3, 0], sizes = [2, 128], strides = [1, 1]} : vector<6x128xf32> to vector<2x128xf32>
    %cst_20 = arith.constant 8.000000e-03 : f32
    %62 = vector.broadcast %cst_20 : f32 to vector<2x128xf32>
    %63 = arith.mulf %61, %62 : vector<2x128xf32>
    %c6 = arith.constant 6 : index
    %c0_21 = arith.constant 0 : index
    %64 = vector.load %arg8[%c6, %c0_21] : memref<8x128xf32, #tpu.memory_space<vmem>>, vector<2x128xf32>
    tpu.vector_store %arg8[%c6, %c0_21], %63 {strides = array<i32>} : memref<8x128xf32, #tpu.memory_space<vmem>>, vector<2x128xf32>,
    return
  }
  func.func @transform_0(%arg0: i32) -> (i32, i32) {
    %c0_i32 = arith.constant 0 : i32
    %c0_i32_0 = arith.constant 0 : i32
    return %c0_i32, %arg0 : i32, i32
  }
  func.func @transform_1(%arg0: i32) -> (i32, i32) {
    %c0_i32 = arith.constant 0 : i32
    %c0_i32_0 = arith.constant 0 : i32
    %c0_i32_1 = arith.constant 0 : i32
    return %c0_i32, %c0_i32_0 : i32, i32
  }
  func.func @transform_2(%arg0: i32) -> (i32, i32) {
    %c0_i32 = arith.constant 0 : i32
    %c0_i32_0 = arith.constant 0 : i32
    %c0_i32_1 = arith.constant 0 : i32
    return %c0_i32, %c0_i32_0 : i32, i32
  }
  func.func @transform_3(%arg0: i32) -> (i32, i32) {
    %c0_i32 = arith.constant 0 : i32
    %c0_i32_0 = arith.constant 0 : i32
    %c0_i32_1 = arith.constant 0 : i32
    return %c0_i32, %c0_i32_0 : i32, i32
  }
  func.func @transform_4(%arg0: i32) -> (i32, i32) {
    %c0_i32 = arith.constant 0 : i32
    %c0_i32_0 = arith.constant 0 : i32
    %c0_i32_1 = arith.constant 0 : i32
    return %c0_i32, %c0_i32_0 : i32, i32
  }
  func.func @transform_5(%arg0: i32) -> (i32, i32) {
    %c0_i32 = arith.constant 0 : i32
    %c0_i32_0 = arith.constant 0 : i32
    %c0_i32_1 = arith.constant 0 : i32
    return %c0_i32, %c0_i32_0 : i32, i32
  }
  func.func @transform_6(%arg0: i32) -> (i32, i32) {
    %c0_i32 = arith.constant 0 : i32
    %c0_i32_0 = arith.constant 0 : i32
    %c0_i32_1 = arith.constant 0 : i32
    return %c0_i32, %c0_i32_0 : i32, i32
  }
  func.func @transform_7(%arg0: i32) -> (i32, i32) {
    %c0_i32 = arith.constant 0 : i32
    %c0_i32_0 = arith.constant 0 : i32
    return %c0_i32, %arg0 : i32, i32
  }
}

</mosaic_0001>

<llo_original>
// kernel: piarch_net_strong.1
$region0: #{piarch_net_strong.1}
  #allocation0 [shape = 'u32[]', space=smem, size = 0x4, offset = 0x4, fixed_abs, tag = 'smem constant byte address 0x4 - core index']
  #allocation1 [shape = 'u32[144,128]{1,0:T(1,128)}', space=vmem, size = 0x12000, scoped, tag = 'internal scratch']
  %s0 = inlined_call_operand.vmem [shape: f32[2,256], index: 0, kind: input, shape index: {}]
  %s1 = inlined_call_operand.vmem [shape: f32[32,2], index: 1, kind: input, shape index: {}]
  %s2 = inlined_call_operand.vmem [shape: f32[32,1], index: 2, kind: input, shape index: {}]
  %s3 = inlined_call_operand.vmem [shape: f32[32,32], index: 3, kind: input, shape index: {}]
  %s4 = inlined_call_operand.vmem [shape: f32[32,1], index: 4, kind: input, shape index: {}]
  %s5 = inlined_call_operand.vmem [shape: f32[6,32], index: 5, kind: input, shape index: {}]
  %s6 = inlined_call_operand.vmem [shape: f32[6,1], index: 6, kind: input, shape index: {}]
  %s7 = inlined_call_operand.hbm [shape: f32[8,256], index: 7, kind: output, shape index: {}]
  %s8 = sld [smem:[#allocation0]]
  $region61: #{piarch_net_strong.1} parent=0
    _
  %s10 = ssub.s32 1, %s8
  %s11 = scalar_select 0, %s10, %s8
  $region1: #{piarch_net_strong.1} parent=0
    #allocation2 [shape = 'u8[8192]{0}', space=vmem, size = 0x2000, scoped, tag = 'output window, operand 0']
    #allocation3 [shape = 's32[2]{0}', space=sflag, size = 0x8, scoped, tag = 'scoped memory for piarch_net_strong.1']
    %12 = vsyncpa [#allocation3], 0
    %s13 = scalar_lea.sflag [#allocation3], 1
    %14 = vsyncpa %s13, 0
    loop: start=0, step=1, limit=4
    $region2: #{piarch_net_strong.1} parent=1 // loop_pre_header
      _
    $region3: #{piarch_net_strong.1} parent=1 // loop_header
      %s16 = sphi 0, %s20
      %p17 = scmp.ge.s32.totalorder %s16, 4
      %s26 = sphi 0, %s28
      %s29 = sphi 0, %s26
      %s30 = sphi 0, %s29
      %s46 = sphi 0, %s30
      %s50 = sphi 0, %s50
      %s52 = sphi 0, %s50
      %s53 = sphi 0, %s52
      %s67 = sphi 0, %s53
      %s71 = sphi 0, %s71
      %s73 = sphi 0, %s71
      %s74 = sphi 0, %s73
      %s88 = sphi 0, %s74
      %s92 = sphi 0, %s92
      %s94 = sphi 0, %s92
      %s95 = sphi 0, %s94
      %s109 = sphi 0, %s95
      %s113 = sphi 0, %s113
      %s115 = sphi 0, %s113
      %s116 = sphi 0, %s115
      %s130 = sphi 0, %s116
      %s134 = sphi 0, %s134
      %s136 = sphi 0, %s134
      %s137 = sphi 0, %s136
      %s151 = sphi 0, %s137
      %s155 = sphi 0, %s155
      %s157 = sphi 0, %s155
      %s158 = sphi 0, %s157
      %s172 = sphi 0, %s158
      %s178 = sphi 0, %s180
      %s181 = sphi 0, %s178
      %s182 = sphi 0, %s181
      %s198 = sphi 0, %s182
    $region4: #{piarch_net_strong.1} parent=1 // loop_header_branch
      %19 = sbr.rel (%p17) target = $region8
    $region5: #{piarch_net_strong.1} parent=1 // loop_body
      %s21 = ssub.s32 %s16, 1
      %s22 = ssub.s32 %s16, 2
      %s23 = sadd.s32 %s16, 1
      %s24 = ssub.s32 %s16, %s23
      %p25 = scmp.eq.s32.totalorder %s24, 0
      %s27 = sadd.s32 %s26, 1
      %s28 = scalar_select %p25, %s26, %s27
      %p31 = pneg %p25
      %p32 = scmp.eq.s32.totalorder %s16, 1
      %p33 = por %p31, %p32
      %p34 = scmp.ne.s32.totalorder %s26, %s29
      %p35 = scmp.eq.s32.totalorder %s16, 0
      %p36 = por %p34, %p35
      %p37 = scmp.ne.s32.totalorder %s26, %s29
      %p38 = scmp.eq.s32.totalorder %s21, 1
      %p39 = por %p37, %p38
      %p40 = scmp.ne.s32.totalorder %s29, %s30
      %p41 = scmp.eq.s32.totalorder %s21, 0
      %p42 = por %p40, %p41
      %p43 = scmp.ne.s32.totalorder %s29, %s30
      %p44 = scmp.eq.s32.totalorder %s22, 1
      %p45 = por %p43, %p44
      %p47 = scmp.ne.s32.totalorder %s30, %s46
      %p48 = scmp.eq.s32.totalorder %s22, 0
      %p49 = por %p47, %p48
      %s51 = sadd.s32 %s50, 1
      %p54 = scmp.eq.s32.totalorder %s16, 1
      %p55 = scmp.ne.s32.totalorder %s50, %s52
      %p56 = scmp.eq.s32.totalorder %s16, 0
      %p57 = por %p55, %p56
      %p58 = scmp.ne.s32.totalorder %s50, %s52
      %p59 = scmp.eq.s32.totalorder %s21, 1
      %p60 = por %p58, %p59
      %p61 = scmp.ne.s32.totalorder %s52, %s53
      %p62 = scmp.eq.s32.totalorder %s21, 0
      %p63 = por %p61, %p62
      %p64 = scmp.ne.s32.totalorder %s52, %s53
      %p65 = scmp.eq.s32.totalorder %s22, 1
      %p66 = por %p64, %p65
      %p68 = scmp.ne.s32.totalorder %s53, %s67
      %p69 = scmp.eq.s32.totalorder %s22, 0
      %p70 = por %p68, %p69
      %s72 = sadd.s32 %s71, 1
      %p75 = scmp.eq.s32.totalorder %s16, 1
      %p76 = scmp.ne.s32.totalorder %s71, %s73
      %p77 = scmp.eq.s32.totalorder %s16, 0
      %p78 = por %p76, %p77
      %p79 = scmp.ne.s32.totalorder %s71, %s73
      %p80 = scmp.eq.s32.totalorder %s21, 1
      %p81 = por %p79, %p80
      %p82 = scmp.ne.s32.totalorder %s73, %s74
      %p83 = scmp.eq.s32.totalorder %s21, 0
      %p84 = por %p82, %p83
      %p85 = scmp.ne.s32.totalorder %s73, %s74
      %p86 = scmp.eq.s32.totalorder %s22, 1
      %p87 = por %p85, %p86
      %p89 = scmp.ne.s32.totalorder %s74, %s88
      %p90 = scmp.eq.s32.totalorder %s22, 0
      %p91 = por %p89, %p90
      %s93 = sadd.s32 %s92, 1
      %p96 = scmp.eq.s32.totalorder %s16, 1
      %p97 = scmp.ne.s32.totalorder %s92, %s94
      %p98 = scmp.eq.s32.totalorder %s16, 0
      %p99 = por %p97, %p98
      %p100 = scmp.ne.s32.totalorder %s92, %s94
      %p101 = scmp.eq.s32.totalorder %s21, 1
      %p102 = por %p100, %p101
      %p103 = scmp.ne.s32.totalorder %s94, %s95
      %p104 = scmp.eq.s32.totalorder %s21, 0
      %p105 = por %p103, %p104
      %p106 = scmp.ne.s32.totalorder %s94, %s95
      %p107 = scmp.eq.s32.totalorder %s22, 1
      %p108 = por %p106, %p107
      %p110 = scmp.ne.s32.totalorder %s95, %s109
      %p111 = scmp.eq.s32.totalorder %s22, 0
      %p112 = por %p110, %p111
      %s114 = sadd.s32 %s113, 1
      %p117 = scmp.eq.s32.totalorder %s16, 1
      %p118 = scmp.ne.s32.totalorder %s113, %s115
      %p119 = scmp.eq.s32.totalorder %s16, 0
      %p120 = por %p118, %p119
      %p121 = scmp.ne.s32.totalorder %s113, %s115
      %p122 = scmp.eq.s32.totalorder %s21, 1
      %p123 = por %p121, %p122
      %p124 = scmp.ne.s32.totalorder %s115, %s116
      %p125 = scmp.eq.s32.totalorder %s21, 0
      %p126 = por %p124, %p125
      %p127 = scmp.ne.s32.totalorder %s115, %s116
      %p128 = scmp.eq.s32.totalorder %s22, 1
      %p129 = por %p127, %p128
      %p131 = scmp.ne.s32.totalorder %s116, %s130
      %p132 = scmp.eq.s32.totalorder %s22, 0
      %p133 = por %p131, %p132
      %s135 = sadd.s32 %s134, 1
      %p138 = scmp.eq.s32.totalorder %s16, 1
      %p139 = scmp.ne.s32.totalorder %s134, %s136
      %p140 = scmp.eq.s32.totalorder %s16, 0
      %p141 = por %p139, %p140
      %p142 = scmp.ne.s32.totalorder %s134, %s136
      %p143 = scmp.eq.s32.totalorder %s21, 1
      %p144 = por %p142, %p143
      %p145 = scmp.ne.s32.totalorder %s136, %s137
      %p146 = scmp.eq.s32.totalorder %s21, 0
      %p147 = por %p145, %p146
      %p148 = scmp.ne.s32.totalorder %s136, %s137
      %p149 = scmp.eq.s32.totalorder %s22, 1
      %p150 = por %p148, %p149
      %p152 = scmp.ne.s32.totalorder %s137, %s151
      %p153 = scmp.eq.s32.totalorder %s22, 0
      %p154 = por %p152, %p153
      %s156 = sadd.s32 %s155, 1
      %p159 = scmp.eq.s32.totalorder %s16, 1
      %p160 = scmp.ne.s32.totalorder %s155, %s157
      %p161 = scmp.eq.s32.totalorder %s16, 0
      %p162 = por %p160, %p161
      %p163 = scmp.ne.s32.totalorder %s155, %s157
      %p164 = scmp.eq.s32.totalorder %s21, 1
      %p165 = por %p163, %p164
      %p166 = scmp.ne.s32.totalorder %s157, %s158
      %p167 = scmp.eq.s32.totalorder %s21, 0
      %p168 = por %p166, %p167
      %p169 = scmp.ne.s32.totalorder %s157, %s158
      %p170 = scmp.eq.s32.totalorder %s22, 1
      %p171 = por %p169, %p170
      %p173 = scmp.ne.s32.totalorder %s158, %s172
      %p174 = scmp.eq.s32.totalorder %s22, 0
      %p175 = por %p173, %p174
      %s176 = ssub.s32 %s16, %s23
      %p177 = scmp.eq.s32.totalorder %s176, 0
      %s179 = sadd.s32 %s178, 1
      %s180 = scalar_select %p177, %s178, %s179
      %p183 = pneg %p177
      %p184 = scmp.eq.s32.totalorder %s16, 1
      %p185 = por %p183, %p184
      %p186 = scmp.ne.s32.totalorder %s178, %s181
      %p187 = scmp.eq.s32.totalorder %s16, 0
      %p188 = por %p186, %p187
      %p189 = scmp.ne.s32.totalorder %s178, %s181
      %p190 = scmp.eq.s32.totalorder %s21, 1
      %p191 = por %p189, %p190
      %p192 = scmp.ne.s32.totalorder %s181, %s182
      %p193 = scmp.eq.s32.totalorder %s21, 0
      %p194 = por %p192, %p193
      %p195 = scmp.ne.s32.totalorder %s181, %s182
      %p196 = scmp.eq.s32.totalorder %s22, 1
      %p197 = por %p195, %p196
      %p199 = scmp.ne.s32.totalorder %s182, %s198
      %p200 = scmp.eq.s32.totalorder %s22, 0
      %p201 = por %p199, %p200
      %p202 = scmp.le.s32.totalorder 1, %s16
      %p203 = scmp.lt.s32.totalorder %s16, 3
      %p204 = pnand %p202, %p203
      %p205 = pneg %p204
      // Predicated region
      $region9: #{piarch_net_strong.1} parent=5 // pred_check
        _
      $region10: #{piarch_net_strong.1} parent=5 // pred_check_branch
        %207 = sbr.rel (%p204) target = $region12
      $region11: #{piarch_net_strong.1} parent=5 // pred_region
        %s208 = ssub.s32 %s16, 1
        // Predicated region
        $region13: #{piarch_net_strong.1} parent=11 // pred_check
          %p209 = pneg %p63
        $region14: #{piarch_net_strong.1} parent=11 // pred_check_branch
          %211 = sbr.rel (%p209) target = $region16
        $region15: #{piarch_net_strong.1} parent=11 // pred_region
          _
        $region16: #{piarch_net_strong.1} parent=11 // pred_fallthru
          _
        // Predicated region
        $region17: #{piarch_net_strong.1} parent=11 // pred_check
          %p212 = pneg %p84
        $region18: #{piarch_net_strong.1} parent=11 // pred_check_branch
          %214 = sbr.rel (%p212) target = $region20
        $region19: #{piarch_net_strong.1} parent=11 // pred_region
          _
        $region20: #{piarch_net_strong.1} parent=11 // pred_fallthru
          _
        // Predicated region
        $region21: #{piarch_net_strong.1} parent=11 // pred_check
          %p215 = pneg %p105
        $region22: #{piarch_net_strong.1} parent=11 // pred_check_branch
          %217 = sbr.rel (%p215) target = $region24
        $region23: #{piarch_net_strong.1} parent=11 // pred_region
          _
        $region24: #{piarch_net_strong.1} parent=11 // pred_fallthru
          _
        // Predicated region
        $region25: #{piarch_net_strong.1} parent=11 // pred_check
          %p218 = pneg %p126
        $region26: #{piarch_net_strong.1} parent=11 // pred_check_branch
          %220 = sbr.rel (%p218) target = $region28
        $region27: #{piarch_net_strong.1} parent=11 // pred_region
          _
        $region28: #{piarch_net_strong.1} parent=11 // pred_fallthru
          _
        // Predicated region
        $region29: #{piarch_net_strong.1} parent=11 // pred_check
          %p221 = pneg %p147
        $region30: #{piarch_net_strong.1} parent=11 // pred_check_branch
          %223 = sbr.rel (%p221) target = $region32
        $region31: #{piarch_net_strong.1} parent=11 // pred_region
          _
        $region32: #{piarch_net_strong.1} parent=11 // pred_fallthru
          _
        // Predicated region
        $region33: #{piarch_net_strong.1} parent=11 // pred_check
          %p224 = pneg %p168
        $region34: #{piarch_net_strong.1} parent=11 // pred_check_branch
          %226 = sbr.rel (%p224) target = $region36
        $region35: #{piarch_net_strong.1} parent=11 // pred_region
          _
        $region36: #{piarch_net_strong.1} parent=11 // pred_fallthru
          _
      $region12: #{piarch_net_strong.1} parent=5 // pred_fallthru
        _
      %p227 = scmp.lt.s32.totalorder %s16, 2
      // Predicated region
      $region37: #{piarch_net_strong.1} parent=5 // pred_check
        %p228 = pneg %p227
      $region38: #{piarch_net_strong.1} parent=5 // pred_check_branch
        %230 = sbr.rel (%p228) target = $region40
      $region39: #{piarch_net_strong.1} parent=5 // pred_region
        // Predicated region
        $region41: #{piarch_net_strong.1} parent=39 // pred_check
          %p231 = pneg %p36
        $region42: #{piarch_net_strong.1} parent=39 // pred_check_branch
          %233 = sbr.rel (%p231) target = $region44
        $region43: #{piarch_net_strong.1} parent=39 // pred_region
          %p234 = scmp.lt.s32.totalorder %s16, 1
          %s235 = scalar_select %p234, %s16, 1
          %s236 = smul.addr %s235, 2
          %s237 = scalar_lea.vmem %s0, %s236
        $region44: #{piarch_net_strong.1} parent=39 // pred_fallthru
          _
      $region40: #{piarch_net_strong.1} parent=5 // pred_fallthru
        _
      %p238 = scmp.le.s32.totalorder 1, %s16
      %p239 = scmp.lt.s32.totalorder %s16, 3
      %p240 = pnand %p238, %p239
      %p241 = pneg %p240
      // Predicated region
      $region45: #{piarch_net_strong.1} parent=5 // pred_check
        _
      $region46: #{piarch_net_strong.1} parent=5 // pred_check_branch
        %243 = sbr.rel (%p240) target = $region48
      $region47: #{piarch_net_strong.1} parent=5 // pred_region
        %s244 = ssub.s32 %s16, 1
        %p245 = scmp.lt.s32.totalorder %s21, 1
        %s246 = scalar_select %p245, %s21, 1
        %s247 = smul.addr %s246, 2
        %s248 = scalar_lea.vmem %s0, %s247
        %p249 = pneg %p42
        %p250 = pneg %p39
        %p251 = pneg %p63
        %p252 = pneg %p60
        %p253 = pneg %p84
        %p254 = pneg %p81
        %p255 = pneg %p105
        %p256 = pneg %p102
        %p257 = pneg %p126
        %p258 = pneg %p123
        %p259 = pneg %p147
        %p260 = pneg %p144
        %p261 = pneg %p168
        %p262 = pneg %p165
        %p263 = pneg %p194
        %p264 = pneg %p191
        %s265 = sand.u32 %s181, 1
        %s266 = scalar_lea.sflag [#allocation3], %s265
        %s267 = sand.u32 %s181, 1
        %s268 = smul.addr %s267, 8
        %s269 = scalar_lea.vmem [#allocation2], %s268
        %p270 = scmp.lt.s32.totalorder %s21, 1
        %s271 = scalar_select %p270, %s21, 1
        %s272 = smul.addr %s271, 2
        %s273 = scalar_lea.vmem %s0, %s272
        %v274 = vld [vmem:[%s273] sm:$0x3]
        %v275 = vld [vmem:[%s1] sm:$0xff]
        %v276 = vld [vmem:[%s1 + $0x8] sm:$0xff]
        %v277 = vld [vmem:[%s1 + $0x10] sm:$0xff]
        %v278 = vld [vmem:[%s1 + $0x18] sm:$0xff]
        %280 = vset.pattern.permute.xlu0 0
        %281 = vperm.xlu0 %280, %v275
        %v282 = vpop.permute.xlu0 %281
        %285 = vset.pattern.permute.xlu0 0
        %286 = vperm.xlu0 %285, %v276
        %v287 = vpop.permute.xlu0 %286
        %290 = vset.pattern.permute.xlu0 0
        %291 = vperm.xlu0 %290, %v277
        %v292 = vpop.permute.xlu0 %291
        %295 = vset.pattern.permute.xlu0 0
        %296 = vperm.xlu0 %295, %v278
        %v297 = vpop.permute.xlu0 %296
        %v299 = vlaneseq
        %v300 = vshrl.u32 %v299, 7
        %v301 = vsub.s32 0, %v300
        %v302 = vrot.slane %v274, %v301
        %v303 = vmul.f32 %v282, %v302
        %v304 = vmul.f32 %v287, %v302
        %v305 = vmul.f32 %v292, %v302
        %v306 = vmul.f32 %v297, %v302
        %307 = vset.pattern.permute.xlu0 1
        %308 = vperm.xlu0 %307, %v275
        %v309 = vpop.permute.xlu0 %308
        %311 = vset.pattern.permute.xlu0 1
        %312 = vperm.xlu0 %311, %v276
        %v313 = vpop.permute.xlu0 %312
        %315 = vset.pattern.permute.xlu0 1
        %316 = vperm.xlu0 %315, %v277
        %v317 = vpop.permute.xlu0 %316
        %319 = vset.pattern.permute.xlu0 1
        %320 = vperm.xlu0 %319, %v278
        %v321 = vpop.permute.xlu0 %320
        %v323 = vlaneseq
        %v324 = vshrl.u32 %v323, 7
        %v325 = vsub.s32 1, %v324
        %v326 = vrot.slane %v274, %v325
        %v327 = vmul.f32 %v309, %v326
        %v328 = vmul.f32 %v313, %v326
        %v329 = vmul.f32 %v317, %v326
        %v330 = vmul.f32 %v321, %v326
        %v331 = vadd.f32 %v303, %v327
        %v332 = vadd.f32 %v304, %v328
        %v333 = vadd.f32 %v305, %v329
        %v334 = vadd.f32 %v306, %v330
        %v335 = vld [vmem:[%s2] sm:$0xff]
        %v336 = vld [vmem:[%s2 + $0x8] sm:$0xff]
        %v337 = vld [vmem:[%s2 + $0x10] sm:$0xff]
        %v338 = vld [vmem:[%s2 + $0x18] sm:$0xff]
        %340 = vset.pattern.permute.xlu0 0
        %341 = vperm.xlu0 %340, %v335
        %v342 = vpop.permute.xlu0 %341
        %345 = vset.pattern.permute.xlu0 0
        %346 = vperm.xlu0 %345, %v336
        %v347 = vpop.permute.xlu0 %346
        %350 = vset.pattern.permute.xlu0 0
        %351 = vperm.xlu0 %350, %v337
        %v352 = vpop.permute.xlu0 %351
        %355 = vset.pattern.permute.xlu0 0
        %356 = vperm.xlu0 %355, %v338
        %v357 = vpop.permute.xlu0 %356
        %v359 = vadd.f32 %v331, %v342
        %v360 = vadd.f32 %v332, %v347
        %v361 = vadd.f32 %v333, %v352
        %v362 = vadd.f32 %v334, %v357
        %v363 = vtanh.pop %v359
        %v364 = vtanh.pop %v360
        %v365 = vtanh.pop %v361
        %v366 = vtanh.pop %v362
        %v367 = vld [vmem:[%s3] sm:$0xff]
        %v368 = vld [vmem:[%s3 + $0x8] sm:$0xff]
        %v369 = vld [vmem:[%s3 + $0x10] sm:$0xff]
        %v370 = vld [vmem:[%s3 + $0x18] sm:$0xff]
        %v371 = vld [vmem:[%s4] sm:$0xff]
        %v372 = vld [vmem:[%s4 + $0x8] sm:$0xff]
        %v373 = vld [vmem:[%s4 + $0x10] sm:$0xff]
        %v374 = vld [vmem:[%s4 + $0x18] sm:$0xff]
        %376 = vset.pattern.permute.xlu0 0
        %377 = vperm.xlu0 %376, %v371
        %v378 = vpop.permute.xlu0 %377
        %381 = vset.pattern.permute.xlu0 0
        %382 = vperm.xlu0 %381, %v372
        %v383 = vpop.permute.xlu0 %382
        %386 = vset.pattern.permute.xlu0 0
        %387 = vperm.xlu0 %386, %v373
        %v388 = vpop.permute.xlu0 %387
        %391 = vset.pattern.permute.xlu0 0
        %392 = vperm.xlu0 %391, %v374
        %v393 = vpop.permute.xlu0 %392
        %vm395 = vcmask 261120
        %v397 = vsel %vm395, %v367, 0
        %v400 = vsel %vm395, %v368, 0
        %v403 = vsel %vm395, %v369, 0
        %v406 = vsel %vm395, %v370, 0
        %408 = vmatprep.subr.mxu0 0.0
        %409 = vmatpush1.msra.mxu0 %v363
        %410 = vmatprep.subr.mxu0 0.0
        %411 = vmatpush1.msra.mxu0 %v364
        %412 = vmatprep.subr.mxu0 0.0
        %413 = vmatpush1.msra.mxu0 %v365
        %414 = vmatprep.subr.mxu0 0.0
        %415 = vmatpush1.msra.mxu0 %v366
        %416 = vmatprep.subr.mxu0 0.0
        %417 = vmatpush1.msra.mxu0 0.0
        %418 = vmatprep.subr.mxu0 0.0
        %419 = vmatpush1.msra.mxu0 0.0
        %420 = vmatprep.subr.mxu0 0.0
        %421 = vmatpush1.msra.mxu0 0.0
        %422 = vmatprep.subr.mxu0 0.0
        %423 = vmatpush1.msra.mxu0 0.0
        %424 = vmatprep.subr.mxu0 0.0
        %425 = vmatpush1.msra.mxu0 0.0
        %426 = vmatprep.subr.mxu0 0.0
        %427 = vmatpush1.msra.mxu0 0.0
        %428 = vmatprep.subr.mxu0 0.0
        %429 = vmatpush1.msra.mxu0 0.0
        %430 = vmatprep.subr.mxu0 0.0
        %431 = vmatpush1.msra.mxu0 0.0
        %432 = vmatprep.subr.mxu0 0.0
        %433 = vmatpush1.msra.mxu0 0.0
        %434 = vmatprep.subr.mxu0 0.0
        %435 = vmatpush1.msra.mxu0 0.0
        %436 = vmatprep.subr.mxu0 0.0
        %437 = vmatpush1.msra.mxu0 0.0
        %438 = vmatprep.subr.mxu0 0.0
        %439 = vmatpush1.msra.mxu0 0.0
        %440 = vmatprep.subr.mxu0 0.0
        %441 = vmatpush1.msra.mxu0 0.0
        %442 = vmatprep.subr.mxu0 0.0
        %443 = vmatpush1.msra.mxu0 0.0
        %444 = vmatprep.subr.mxu0 0.0
        %445 = vmatpush1.msra.mxu0 0.0
        %446 = vmatprep.subr.mxu0 0.0
        %447 = vmatpush1.msra.mxu0 0.0
        %448 = vmatprep.subr.mxu0 0.0
        %449 = vmatpush1.msra.mxu0 0.0
        %450 = vmatprep.subr.mxu0 0.0
        %451 = vmatpush1.msra.mxu0 0.0
        %452 = vmatprep.subr.mxu0 0.0
        %453 = vmatpush1.msra.mxu0 0.0
        %454 = vmatprep.subr.mxu0 0.0
        %455 = vmatpush1.msra.mxu0 0.0
        %456 = vmatprep.subr.mxu0 0.0
        %457 = vmatpush1.msra.mxu0 0.0
        %458 = vmatprep.subr.mxu0 0.0
        %459 = vmatpush1.msra.mxu0 0.0
        %460 = vmatprep.subr.mxu0 0.0
        %461 = vmatpush1.msra.mxu0 0.0
        %462 = vmatprep.subr.mxu0 0.0
        %463 = vmatpush1.msra.mxu0 0.0
        %464 = vmatprep.subr.mxu0 0.0
        %465 = vmatpush1.msra.mxu0 0.0
        %466 = vmatprep.subr.mxu0 0.0
        %467 = vmatpush1.msra.mxu0 0.0
        %468 = vmatprep.subr.mxu0 0.0
        %469 = vmatpush1.msra.mxu0 0.0
        %470 = vmatprep.subr.mxu0 0.0
        %471 = vmatpush1.msra.mxu0 0.0
        %472 = vmatprep.mubr.f32.mxu0 0.0
        %473 = vmatmul.mubr.f32.gmra.mrb[0].mxu0 %v397
        %v474 = vpop.f32.mrb[0].mxu0
        %v475 = vadd.f32 %v378, %v474
        %v476 = vpop.f32.mrb[0].mxu0
        %477 = vmatprep.mubr.f32.mxu0 0.0
        %478 = vmatmul.mubr.f32.gmra.mrb[0].mxu0 %v400
        %v479 = vpop.f32.mrb[0].mxu0
        %v480 = vadd.f32 %v383, %v479
        %v481 = vpop.f32.mrb[0].mxu0
        %482 = vmatprep.mubr.f32.mxu0 0.0
        %483 = vmatmul.mubr.f32.gmra.mrb[0].mxu0 %v403
        %v484 = vpop.f32.mrb[0].mxu0
        %v485 = vadd.f32 %v388, %v484
        %v486 = vpop.f32.mrb[0].mxu0
        %487 = vmatprep.mubr.f32.mxu0 0.0
        %488 = vmatmul.mubr.f32.gmra.mrb[0].mxu0 %v406
        %v489 = vpop.f32.mrb[0].mxu0
        %v490 = vadd.f32 %v393, %v489
        %v491 = vpop.f32.mrb[0].mxu0
        %492 = vdwg.mxu0
        %v493 = vtanh.pop %v475
        %v494 = vtanh.pop %v480
        %v495 = vtanh.pop %v485
        %v496 = vtanh.pop %v490
        %v497 = vld [vmem:[%s5] sm:$0x3f]
        %v498 = vld [vmem:[%s6] sm:$0x3f]
        %500 = vset.pattern.permute.xlu0 0
        %501 = vperm.xlu0 %500, %v498
        %v502 = vpop.permute.xlu0 %501
        %v505 = vsel %vm395, %v497, 0
        %507 = vmatprep.subr.mxu0 0.0
        %508 = vmatpush1.msra.mxu0 %v493
        %509 = vmatprep.subr.mxu0 0.0
        %510 = vmatpush1.msra.mxu0 %v494
        %511 = vmatprep.subr.mxu0 0.0
        %512 = vmatpush1.msra.mxu0 %v495
        %513 = vmatprep.subr.mxu0 0.0
        %514 = vmatpush1.msra.mxu0 %v496
        %515 = vmatprep.subr.mxu0 0.0
        %516 = vmatpush1.msra.mxu0 0.0
        %517 = vmatprep.subr.mxu0 0.0
        %518 = vmatpush1.msra.mxu0 0.0
        %519 = vmatprep.subr.mxu0 0.0
        %520 = vmatpush1.msra.mxu0 0.0
        %521 = vmatprep.subr.mxu0 0.0
        %522 = vmatpush1.msra.mxu0 0.0
        %523 = vmatprep.subr.mxu0 0.0
        %524 = vmatpush1.msra.mxu0 0.0
        %525 = vmatprep.subr.mxu0 0.0
        %526 = vmatpush1.msra.mxu0 0.0
        %527 = vmatprep.subr.mxu0 0.0
        %528 = vmatpush1.msra.mxu0 0.0
        %529 = vmatprep.subr.mxu0 0.0
        %530 = vmatpush1.msra.mxu0 0.0
        %531 = vmatprep.subr.mxu0 0.0
        %532 = vmatpush1.msra.mxu0 0.0
        %533 = vmatprep.subr.mxu0 0.0
        %534 = vmatpush1.msra.mxu0 0.0
        %535 = vmatprep.subr.mxu0 0.0
        %536 = vmatpush1.msra.mxu0 0.0
        %537 = vmatprep.subr.mxu0 0.0
        %538 = vmatpush1.msra.mxu0 0.0
        %539 = vmatprep.subr.mxu0 0.0
        %540 = vmatpush1.msra.mxu0 0.0
        %541 = vmatprep.subr.mxu0 0.0
        %542 = vmatpush1.msra.mxu0 0.0
        %543 = vmatprep.subr.mxu0 0.0
        %544 = vmatpush1.msra.mxu0 0.0
        %545 = vmatprep.subr.mxu0 0.0
        %546 = vmatpush1.msra.mxu0 0.0
        %547 = vmatprep.subr.mxu0 0.0
        %548 = vmatpush1.msra.mxu0 0.0
        %549 = vmatprep.subr.mxu0 0.0
        %550 = vmatpush1.msra.mxu0 0.0
        %551 = vmatprep.subr.mxu0 0.0
        %552 = vmatpush1.msra.mxu0 0.0
        %553 = vmatprep.subr.mxu0 0.0
        %554 = vmatpush1.msra.mxu0 0.0
        %555 = vmatprep.subr.mxu0 0.0
        %556 = vmatpush1.msra.mxu0 0.0
        %557 = vmatprep.subr.mxu0 0.0
        %558 = vmatpush1.msra.mxu0 0.0
        %559 = vmatprep.subr.mxu0 0.0
        %560 = vmatpush1.msra.mxu0 0.0
        %561 = vmatprep.subr.mxu0 0.0
        %562 = vmatpush1.msra.mxu0 0.0
        %563 = vmatprep.subr.mxu0 0.0
        %564 = vmatpush1.msra.mxu0 0.0
        %565 = vmatprep.subr.mxu0 0.0
        %566 = vmatpush1.msra.mxu0 0.0
        %567 = vmatprep.subr.mxu0 0.0
        %568 = vmatpush1.msra.mxu0 0.0
        %569 = vmatprep.subr.mxu0 0.0
        %570 = vmatpush1.msra.mxu0 0.0
        %571 = vmatprep.mubr.f32.mxu0 0.0
        %572 = vmatmul.mubr.f32.gmra.mrb[0].mxu0 %v505
        %v573 = vpop.f32.mrb[0].mxu0
        %v574 = vadd.f32 %v502, %v573
        %v575 = vpop.f32.mrb[0].mxu0
        %576 = vdwg.mxu0
        %v577 = vsub.f32 2.0, %v274
        %v579 = vrot.slane %v274, 7
        %v581 = vmul.f32 %v577, %v579
        %v582 = vmul.f32 %v581, %v274
        %v583 = vlaneseq
        %v584 = vshrl.u32 %v583, 7
        %vm585 = vcmp.eq.s32.totalorder %v584, 2
        %vm586 = vcmp.eq.s32.totalorder %v584, 5
        %vm587 = vmor %vm585, %vm586
        %v588 = vlaneseq
        %v589 = vshrl.u32 %v588, 7
        %v590 = vsub.s32 1, %v589
        %v591 = vrot.slane %v582, %v590
        %v592 = vsel %vm587, 1.0, %v591
        %vm593 = vcmp.eq.s32.totalorder %v584, 1
        %vm594 = vcmp.eq.s32.totalorder %v584, 4
        %vm595 = vmor %vm593, %vm594
        %v596 = vsub.f32 1.0, %v274
        %v597 = vlaneseq
        %v598 = vshrl.u32 %v597, 7
        %v599 = vsub.s32 0, %v598
        %v600 = vrot.slane %v596, %v599
        %v601 = vsel %vm595, %v600, 1.0
        %v602 = vmul.f32 %v574, %v592
        %v603 = vmul.f32 %v602, %v601
        %vm604 = vcmp.eq.s32.totalorder %v584, 0
        %v605 = vadd.f32 %v603, %v326
        %v606 = vsel %vm604, %v605, %v603
        %607 = vst [vmem:[%s269] sm:$0x3f] %v606
        %v608 = vmul.f32 %v606, 0.008
        %609 = vst [vmem:[%s269 + $0x3] sm:$0x18] %v608
        %s610 = sand.u32 %s181, 1
        %s611 = scalar_lea.sflag [#allocation3], %s610
        %s612 = sand.u32 %s181, 1
        %s613 = smul.addr %s612, 8
        %s614 = scalar_lea.vmem [#allocation2], %s613
        // Predicated region
        $region49: #{piarch_net_strong.1} parent=47 // pred_check
          %p615 = pneg %p191
        $region50: #{piarch_net_strong.1} parent=47 // pred_check_branch
          %617 = sbr.rel (%p615) target = $region52
        $region51: #{piarch_net_strong.1} parent=47 // pred_region
          %s619 = ssub.s32 128, 128
          %620 = vsyncadd %s611, %s619
          %s621 = smul.addr %s21, 128
          %s622 = scalar_lea.hbm %s7, %s621
          %s624 = sshll.u32 %s614, 4
          %s625 = int_to_ptr.vmem [resolvable:$true] %s624
          %627 = dma.vmem_to_hbm [thread:$0]  %s625, 128, %s622, %s611
        $region52: #{piarch_net_strong.1} parent=47 // pred_fallthru
          _
      $region48: #{piarch_net_strong.1} parent=5 // pred_fallthru
        _
      %p628 = scmp.le.s32.totalorder 2, %s16
      // Predicated region
      $region53: #{piarch_net_strong.1} parent=5 // pred_check
        %p629 = pneg %p628
      $region54: #{piarch_net_strong.1} parent=5 // pred_check_branch
        %631 = sbr.rel (%p629) target = $region56
      $region55: #{piarch_net_strong.1} parent=5 // pred_region
        %s632 = ssub.s32 %s16, 2
        // Predicated region
        $region57: #{piarch_net_strong.1} parent=55 // pred_check
          %p633 = pneg %p197
        $region58: #{piarch_net_strong.1} parent=55 // pred_check_branch
          %635 = sbr.rel (%p633) target = $region60
        $region59: #{piarch_net_strong.1} parent=55 // pred_region
          %s636 = sand.u32 %s182, 1
          %s637 = scalar_lea.sflag [#allocation3], %s636
          %s638 = sand.u32 %s182, 1
          %s639 = smul.addr %s638, 8
          %s640 = scalar_lea.vmem [#allocation2], %s639
          %641 = dma.done %s637, 128
        $region60: #{piarch_net_strong.1} parent=55 // pred_fallthru
          _
      $region56: #{piarch_net_strong.1} parent=5 // pred_fallthru
        _
    $region6: #{piarch_net_strong.1} parent=1 // loop_footer
      %s20 = sadd.s32 1, %s16
    $region7: #{piarch_net_strong.1} parent=1 // loop_footer_branch
      %15 = sbr.rel target = $region3
    $region8: #{piarch_net_strong.1} parent=1 // loop_exit
      _
    %642 = vsyncpa [#allocation3], 1
    %s643 = scalar_lea.sflag [#allocation3], 1
    %644 = vsyncpa %s643, 1

</llo_original>
